<compile_context>
chip_gen: v6e
topology: v6e:2x2x1
jax: 0.10.0
libtpu: 0.0.40
codegen_flags: <defaults>
</compile_context>

<pallas_src>
import jax
import jax.numpy as jnp
from jax.experimental import pallas as pl
from jax.experimental.pallas import tpu as pltpu

_LANE = 128
_SUBLANE = 8
_TILE_BYTES_TARGET = 2 * 1024 * 1024                 # ~2 MiB output tile (x2 buffers = 4 MiB)
_MAX_TILE_ROWS = _TILE_BYTES_TARGET // (_LANE * 4)   # 4096 f32 rows of width 128

_ON_TPU = jax.default_backend() == "tpu"
_HAS_HW_PRNG = hasattr(pltpu, "prng_seed") and hasattr(pltpu, "stateful_normal")


def _round_up(x, m):
    return ((x + m - 1) // m) * m


def _flat_tiling(total):
    """Pad a flat element count into a lane-dense (rows, 128) slab and pick a row tile."""
    total_pad = _round_up(max(total, 1), _SUBLANE * _LANE)
    rows = total_pad // _LANE                     # always a multiple of 8
    tile_rows = min(rows, _MAX_TILE_ROWS)
    # If all rows fit one grid step but there is enough work to split, halve the tile so
    # the 'parallel' grid has >= 2 steps (v7x's second TensorCore; no effect on v5e/v6e).
    if tile_rows == rows and rows >= 2 * _SUBLANE:
        tile_rows = _round_up(rows // 2, _SUBLANE)
    rows = _round_up(rows, tile_rows)
    return rows, tile_rows


def _compiler_params():
    # Mosaic-specific params only when actually targeting TPU.
    if _ON_TPU:
        return pltpu.CompilerParams(dimension_semantics=("parallel",))
    return None


# ----------------------------- majority baseline ---------------------------- #

def majority_baseline(batch_size, num_classes):
    # Per perf review: a kernel for a constant costs two HBM round-trips + a launch;
    # a zeros broadcast is folded into the consumer by XLA for free.
    return jnp.zeros((batch_size, num_classes), dtype=jnp.float32)


# ------------------------- random baseline: TPU HW PRNG --------------------- #

def _random_kernel_hw(seed_ref, out_ref):
    # Independent hardware-PRNG stream per grid tile: mix user seed with grid position.
    pltpu.prng_seed(seed_ref[0], pl.program_id(0))
    out_ref[...] = pltpu.stateful_normal(out_ref.shape, out_ref.dtype)


# ---------------- random baseline: portable fallback (non-TPU) -------------- #

def _i32(v):
    """Python int -> int32 constant with two's-complement wrap."""
    v &= 0xFFFFFFFF
    if v >= (1 << 31):
        v -= 1 << 32
    return jnp.int32(v)


def _hash32(x):
    # lowbias32 integer hash; logical right shifts emulated with masks (stays in int32).
    x = x ^ ((x >> 16) & 0xFFFF)
    x = x * _i32(0x7FEB352D)
    x = x ^ ((x >> 15) & 0x1FFFF)
    x = x * _i32(0x846CA68B)
    x = x ^ ((x >> 16) & 0xFFFF)
    return x


# Acklam's rational approximation of the inverse standard-normal CDF.
_A = (-3.969683028665376e+01, 2.209460984245205e+02, -2.759285104469687e+02,
      1.383577518672690e+02, -3.066479806614716e+01, 2.506628277459239e+00)
_B = (-5.447609879822406e+01, 1.615858368580409e+02, -1.556989798598866e+02,
      6.680131188771972e+01, -1.328068155288572e+01)
_C = (-7.784894002430293e-03, -3.223964580411365e-01, -2.400758277161838e+00,
      -2.549732539343734e+00, 4.374664141464968e+00, 2.938163982698783e+00)
_D = (7.784695709041462e-03, 3.224671290700398e-01, 2.445134137142996e+00,
      3.754408661907416e+00)
_PLOW = 0.02425


def _poly(coefs, x):
    acc = x * jnp.float32(coefs[0]) + jnp.float32(coefs[1])
    for c in coefs[2:]:
        acc = acc * x + jnp.float32(c)
    return acc


def _inv_normal_cdf(p):
    pm = jnp.minimum(p, 1.0 - p)                           # (0, 0.5]
    tail_sign = jnp.where(p < 0.5, jnp.float32(1.0), jnp.float32(-1.0))
    t = jnp.sqrt(-2.0 * jnp.log(pm))
    x_tail = _poly(_C, t) / (_poly(_D, t) * t + 1.0)
    q = 0.5 - pm
    r = q * q
    x_cent = _poly(_A, r) * q / (_poly(_B, r) * r + 1.0)
    return jnp.where(pm < _PLOW, tail_sign * x_tail, -tail_sign * x_cent)


def _random_kernel_portable(seed_ref, out_ref):
    i = pl.program_id(0)
    tr, tc = out_ref.shape
    row = jax.lax.broadcasted_iota(jnp.int32, (tr, tc), 0)
    col = jax.lax.broadcasted_iota(jnp.int32, (tr, tc), 1)
    ctr = (i * tr + row) * tc + col                        # unique counter per element
    seed_mix = _hash32(seed_ref[0] ^ _i32(0x5BF03635))
    bits = _hash32(ctr * _i32(0x9E3779B1) + seed_mix)
    # 23-bit uniform in (0, 1); never rounds to exactly 0.0 or 1.0.
    u = (((bits >> 9) & 0x7FFFFF).astype(jnp.float32) + 0.5) * jnp.float32(1.0 / (1 << 23))
    out_ref[...] = _inv_normal_cdf(u).astype(out_ref.dtype)


# ------------------------------ random baseline ------------------------------ #

def random_baseline(batch_size, num_classes, seed=0):
    total = batch_size * num_classes
    rows, tile_rows = _flat_tiling(total)
    kernel = _random_kernel_hw if (_ON_TPU and _HAS_HW_PRNG) else _random_kernel_portable
    seed_arr = jnp.asarray([seed], dtype=jnp.int32)
    out = pl.pallas_call(
        kernel,
        out_shape=jax.ShapeDtypeStruct((rows, _LANE), jnp.float32),
        grid=(rows // tile_rows,),
        in_specs=[pl.BlockSpec(memory_space=pltpu.MemorySpace.SMEM)],   # seed scalar
        out_specs=pl.BlockSpec((tile_rows, _LANE), lambda i: (i, 0)),
        compiler_params=_compiler_params(),
    )(seed_arr)
    return out.reshape(-1)[:total].reshape(batch_size, num_classes)


# ---------------------------------- module ----------------------------------- #

class BaselineModels:
    """JAX/Pallas port of the PyTorch BaselineModels module (majority / random)."""

    def __init__(self, vocab_size, num_classes, baseline_type='majority', seed=0):
        self.vocab_size = vocab_size
        self.num_classes = num_classes
        self.baseline_type = baseline_type
        self._seed = seed
        # Mirrors nn.Parameter(torch.randn(1)); never used by forward.
        self.dummy = jax.random.normal(jax.random.PRNGKey(seed), (1,), dtype=jnp.float32)

    def __call__(self, batch):
        sequence_lengths, input_ids = batch
        del sequence_lengths  # ignored, same as the torch module
        batch_size = input_ids.shape[0]
        if self.baseline_type == 'majority':
            return majority_baseline(batch_size, self.num_classes)
        elif self.baseline_type == 'random':
            # TODO(synk): values are N(0,1) from the on-chip PRNG (or counter-hash fallback);
            # they will not bit-match torch.randn, only the distribution is reproduced.
            return random_baseline(batch_size, self.num_classes, seed=self._seed)
        else:
            raise ValueError(f'Unknown baseline type: {self.baseline_type}')


# ---------------------------------- main ------------------------------------ #

if __name__ == "__main__":
    key = jax.random.PRNGKey(0)
    B, S = 2, 8
    vocab_size, num_classes = 32, 4

    input_ids = jax.random.randint(key, (B, S), 1, vocab_size, dtype=jnp.int32)
    sequence_lengths = jnp.full((B,), S, dtype=jnp.int32)
    batch = (sequence_lengths, input_ids)

    # Majority baseline: exactly zeros of shape (B, num_classes).
    model_maj = BaselineModels(vocab_size, num_classes, baseline_type='majority')
    out_maj = jax.block_until_ready(model_maj(batch))
    assert out_maj.shape == (B, num_classes)
    assert out_maj.dtype == jnp.float32
    assert bool(jnp.all(out_maj == 0.0))

    # Random baseline: shape/dtype/finiteness checks (values are N(0,1) samples).
    model_rnd = BaselineModels(vocab_size, num_classes, baseline_type='random')
    out_rnd = jax.block_until_ready(model_rnd(batch))
    assert out_rnd.shape == (B, num_classes)
    assert out_rnd.dtype == jnp.float32
    assert bool(jnp.all(jnp.isfinite(out_rnd)))
    assert bool(jnp.std(out_rnd) > 0.0)  # values vary element-to-element

    print("KERNEL_OK")
</pallas_src>

<mosaic_0001>
module attributes {stable_mosaic.version = 11 : i64} {
  func.func @_random_kernel_portable(%arg0: i32, %arg1: memref<1xi32, #tpu.memory_space<smem>>, %arg2: memref<8x128xf32, #tpu.memory_space<vmem>>) attributes {dimension_semantics = [#tpu.dimension_semantics<arbitrary>], iteration_bounds = array<i64: 1>, scalar_prefetch = 0 : i64, scratch_operands = 0 : i64, tpu.core_type = #tpu.core_type<tc>, window_params = [{transform_indices = @transform_0, window_bounds = array<i64: 1>}, {transform_indices = @transform_1, window_bounds = array<i64: 8, 128>}]} {
    %0 = tpu.iota {dimensions = array<i32: 0>} : vector<8x128xi32>
    %1 = tpu.iota {dimensions = array<i32: 1>} : vector<8x128xi32>
    %c8_i32 = arith.constant 8 : i32
    %2 = arith.muli %arg0, %c8_i32 : i32
    %3 = vector.broadcast %2 : i32 to vector<8x128xi32>
    %4 = arith.addi %3, %0 : vector<8x128xi32>
    %c128_i32 = arith.constant 128 : i32
    %5 = vector.broadcast %c128_i32 : i32 to vector<8x128xi32>
    %6 = arith.muli %4, %5 : vector<8x128xi32>
    %7 = arith.addi %6, %1 : vector<8x128xi32>
    %c0 = arith.constant 0 : index
    %8 = memref.load %arg1[%c0] : memref<1xi32, #tpu.memory_space<smem>>
    %c1542469173_i32 = arith.constant 1542469173 : i32
    %9 = arith.xori %8, %c1542469173_i32 : i32
    %c16_i32 = arith.constant 16 : i32
    %10 = arith.shrsi %9, %c16_i32 : i32
    %c65535_i32 = arith.constant 65535 : i32
    %11 = arith.andi %10, %c65535_i32 : i32
    %12 = arith.xori %9, %11 : i32
    %c2146121005_i32 = arith.constant 2146121005 : i32
    %13 = arith.muli %12, %c2146121005_i32 : i32
    %c15_i32 = arith.constant 15 : i32
    %14 = arith.shrsi %13, %c15_i32 : i32
    %c131071_i32 = arith.constant 131071 : i32
    %15 = arith.andi %14, %c131071_i32 : i32
    %16 = arith.xori %13, %15 : i32
    %c-2073254261_i32 = arith.constant -2073254261 : i32
    %17 = arith.muli %16, %c-2073254261_i32 : i32
    %c16_i32_0 = arith.constant 16 : i32
    %18 = arith.shrsi %17, %c16_i32_0 : i32
    %c65535_i32_1 = arith.constant 65535 : i32
    %19 = arith.andi %18, %c65535_i32_1 : i32
    %20 = arith.xori %17, %19 : i32
    %c-1640531535_i32 = arith.constant -1640531535 : i32
    %21 = vector.broadcast %c-1640531535_i32 : i32 to vector<8x128xi32>
    %22 = arith.muli %7, %21 : vector<8x128xi32>
    %23 = vector.broadcast %20 : i32 to vector<8x128xi32>
    %24 = arith.addi %22, %23 : vector<8x128xi32>
    %c16_i32_2 = arith.constant 16 : i32
    %25 = vector.broadcast %c16_i32_2 : i32 to vector<8x128xi32>
    %26 = arith.shrsi %24, %25 : vector<8x128xi32>
    %c65535_i32_3 = arith.constant 65535 : i32
    %27 = vector.broadcast %c65535_i32_3 : i32 to vector<8x128xi32>
    %28 = arith.andi %26, %27 : vector<8x128xi32>
    %29 = arith.xori %24, %28 : vector<8x128xi32>
    %c2146121005_i32_4 = arith.constant 2146121005 : i32
    %30 = vector.broadcast %c2146121005_i32_4 : i32 to vector<8x128xi32>
    %31 = arith.muli %29, %30 : vector<8x128xi32>
    %c15_i32_5 = arith.constant 15 : i32
    %32 = vector.broadcast %c15_i32_5 : i32 to vector<8x128xi32>
    %33 = arith.shrsi %31, %32 : vector<8x128xi32>
    %c131071_i32_6 = arith.constant 131071 : i32
    %34 = vector.broadcast %c131071_i32_6 : i32 to vector<8x128xi32>
    %35 = arith.andi %33, %34 : vector<8x128xi32>
    %36 = arith.xori %31, %35 : vector<8x128xi32>
    %c-2073254261_i32_7 = arith.constant -2073254261 : i32
    %37 = vector.broadcast %c-2073254261_i32_7 : i32 to vector<8x128xi32>
    %38 = arith.muli %36, %37 : vector<8x128xi32>
    %c16_i32_8 = arith.constant 16 : i32
    %39 = vector.broadcast %c16_i32_8 : i32 to vector<8x128xi32>
    %40 = arith.shrsi %38, %39 : vector<8x128xi32>
    %c65535_i32_9 = arith.constant 65535 : i32
    %41 = vector.broadcast %c65535_i32_9 : i32 to vector<8x128xi32>
    %42 = arith.andi %40, %41 : vector<8x128xi32>
    %43 = arith.xori %38, %42 : vector<8x128xi32>
    %c9_i32 = arith.constant 9 : i32
    %44 = vector.broadcast %c9_i32 : i32 to vector<8x128xi32>
    %45 = arith.shrsi %43, %44 : vector<8x128xi32>
    %c8388607_i32 = arith.constant 8388607 : i32
    %46 = vector.broadcast %c8388607_i32 : i32 to vector<8x128xi32>
    %47 = arith.andi %45, %46 : vector<8x128xi32>
    %48 = arith.sitofp %47 : vector<8x128xi32> to vector<8x128xf32>
    %cst = arith.constant 5.000000e-01 : f32
    %49 = vector.broadcast %cst : f32 to vector<8x128xf32>
    %50 = arith.addf %48, %49 : vector<8x128xf32>
    %cst_10 = arith.constant 1.1920929E-7 : f32
    %51 = vector.broadcast %cst_10 : f32 to vector<8x128xf32>
    %52 = arith.mulf %50, %51 : vector<8x128xf32>
    %cst_11 = arith.constant 1.000000e+00 : f32
    %53 = vector.broadcast %cst_11 : f32 to vector<8x128xf32>
    %54 = arith.subf %53, %52 : vector<8x128xf32>
    %55 = arith.minimumf %52, %54 : vector<8x128xf32>
    %cst_12 = arith.constant 5.000000e-01 : f32
    %56 = vector.broadcast %cst_12 : f32 to vector<8x128xf32>
    %57 = arith.cmpf olt, %52, %56 : vector<8x128xf32>
    %cst_13 = arith.constant 1.000000e+00 : f32
    %cst_14 = arith.constant -1.000000e+00 : f32
    %58 = vector.broadcast %cst_13 : f32 to vector<8x128xf32>
    %59 = vector.broadcast %cst_14 : f32 to vector<8x128xf32>
    %60 = arith.select %57, %58, %59 : vector<8x128xi1>, vector<8x128xf32>
    %61 = math.log %55 : vector<8x128xf32>
    %cst_15 = arith.constant -2.000000e+00 : f32
    %62 = vector.broadcast %cst_15 : f32 to vector<8x128xf32>
    %63 = arith.mulf %62, %61 : vector<8x128xf32>
    %64 = math.sqrt %63 : vector<8x128xf32>
    %cst_16 = arith.constant -0.0077848942 : f32
    %65 = vector.broadcast %cst_16 : f32 to vector<8x128xf32>
    %66 = arith.mulf %64, %65 : vector<8x128xf32>
    %cst_17 = arith.constant -0.322396457 : f32
    %67 = vector.broadcast %cst_17 : f32 to vector<8x128xf32>
    %68 = arith.addf %66, %67 : vector<8x128xf32>
    %69 = arith.mulf %68, %64 : vector<8x128xf32>
    %cst_18 = arith.constant -2.40075827 : f32
    %70 = vector.broadcast %cst_18 : f32 to vector<8x128xf32>
    %71 = arith.addf %69, %70 : vector<8x128xf32>
    %72 = arith.mulf %71, %64 : vector<8x128xf32>
    %cst_19 = arith.constant -2.54973245 : f32
    %73 = vector.broadcast %cst_19 : f32 to vector<8x128xf32>
    %74 = arith.addf %72, %73 : vector<8x128xf32>
    %75 = arith.mulf %74, %64 : vector<8x128xf32>
    %cst_20 = arith.constant 4.37466431 : f32
    %76 = vector.broadcast %cst_20 : f32 to vector<8x128xf32>
    %77 = arith.addf %75, %76 : vector<8x128xf32>
    %78 = arith.mulf %77, %64 : vector<8x128xf32>
    %cst_21 = arith.constant 2.938164 : f32
    %79 = vector.broadcast %cst_21 : f32 to vector<8x128xf32>
    %80 = arith.addf %78, %79 : vector<8x128xf32>
    %cst_22 = arith.constant 0.00778469583 : f32
    %81 = vector.broadcast %cst_22 : f32 to vector<8x128xf32>
    %82 = arith.mulf %64, %81 : vector<8x128xf32>
    %cst_23 = arith.constant 0.322467119 : f32
    %83 = vector.broadcast %cst_23 : f32 to vector<8x128xf32>
    %84 = arith.addf %82, %83 : vector<8x128xf32>
    %85 = arith.mulf %84, %64 : vector<8x128xf32>
    %cst_24 = arith.constant 2.44513416 : f32
    %86 = vector.broadcast %cst_24 : f32 to vector<8x128xf32>
    %87 = arith.addf %85, %86 : vector<8x128xf32>
    %88 = arith.mulf %87, %64 : vector<8x128xf32>
    %cst_25 = arith.constant 3.7544086 : f32
    %89 = vector.broadcast %cst_25 : f32 to vector<8x128xf32>
    %90 = arith.addf %88, %89 : vector<8x128xf32>
    %91 = arith.mulf %90, %64 : vector<8x128xf32>
    %cst_26 = arith.constant 1.000000e+00 : f32
    %92 = vector.broadcast %cst_26 : f32 to vector<8x128xf32>
    %93 = arith.addf %91, %92 : vector<8x128xf32>
    %94 = arith.divf %80, %93 : vector<8x128xf32>
    %cst_27 = arith.constant 5.000000e-01 : f32
    %95 = vector.broadcast %cst_27 : f32 to vector<8x128xf32>
    %96 = arith.subf %95, %55 : vector<8x128xf32>
    %97 = arith.mulf %96, %96 : vector<8x128xf32>
    %cst_28 = arith.constant -39.6968307 : f32
    %98 = vector.broadcast %cst_28 : f32 to vector<8x128xf32>
    %99 = arith.mulf %97, %98 : vector<8x128xf32>
    %cst_29 = arith.constant 220.946106 : f32
    %100 = vector.broadcast %cst_29 : f32 to vector<8x128xf32>
    %101 = arith.addf %99, %100 : vector<8x128xf32>
    %102 = arith.mulf %101, %97 : vector<8x128xf32>
    %cst_30 = arith.constant -275.928497 : f32
    %103 = vector.broadcast %cst_30 : f32 to vector<8x128xf32>
    %104 = arith.addf %102, %103 : vector<8x128xf32>
    %105 = arith.mulf %104, %97 : vector<8x128xf32>
    %cst_31 = arith.constant 138.357758 : f32
    %106 = vector.broadcast %cst_31 : f32 to vector<8x128xf32>
    %107 = arith.addf %105, %106 : vector<8x128xf32>
    %108 = arith.mulf %107, %97 : vector<8x128xf32>
    %cst_32 = arith.constant -30.6647987 : f32
    %109 = vector.broadcast %cst_32 : f32 to vector<8x128xf32>
    %110 = arith.addf %108, %109 : vector<8x128xf32>
    %111 = arith.mulf %110, %97 : vector<8x128xf32>
    %cst_33 = arith.constant 2.50662827 : f32
    %112 = vector.broadcast %cst_33 : f32 to vector<8x128xf32>
    %113 = arith.addf %111, %112 : vector<8x128xf32>
    %114 = arith.mulf %113, %96 : vector<8x128xf32>
    %cst_34 = arith.constant -54.4760971 : f32
    %115 = vector.broadcast %cst_34 : f32 to vector<8x128xf32>
    %116 = arith.mulf %97, %115 : vector<8x128xf32>
    %cst_35 = arith.constant 161.585831 : f32
    %117 = vector.broadcast %cst_35 : f32 to vector<8x128xf32>
    %118 = arith.addf %116, %117 : vector<8x128xf32>
    %119 = arith.mulf %118, %97 : vector<8x128xf32>
    %cst_36 = arith.constant -155.698975 : f32
    %120 = vector.broadcast %cst_36 : f32 to vector<8x128xf32>
    %121 = arith.addf %119, %120 : vector<8x128xf32>
    %122 = arith.mulf %121, %97 : vector<8x128xf32>
    %cst_37 = arith.constant 66.8013153 : f32
    %123 = vector.broadcast %cst_37 : f32 to vector<8x128xf32>
    %124 = arith.addf %122, %123 : vector<8x128xf32>
    %125 = arith.mulf %124, %97 : vector<8x128xf32>
    %cst_38 = arith.constant -13.2806816 : f32
    %126 = vector.broadcast %cst_38 : f32 to vector<8x128xf32>
    %127 = arith.addf %125, %126 : vector<8x128xf32>
    %128 = arith.mulf %127, %97 : vector<8x128xf32>
    %cst_39 = arith.constant 1.000000e+00 : f32
    %129 = vector.broadcast %cst_39 : f32 to vector<8x128xf32>
    %130 = arith.addf %128, %129 : vector<8x128xf32>
    %131 = arith.divf %114, %130 : vector<8x128xf32>
    %cst_40 = arith.constant 2.425000e-02 : f32
    %132 = vector.broadcast %cst_40 : f32 to vector<8x128xf32>
    %133 = arith.cmpf olt, %55, %132 : vector<8x128xf32>
    %134 = arith.mulf %60, %94 : vector<8x128xf32>
    %cst_41 = arith.constant 0.000000e+00 : f32
    %135 = vector.broadcast %cst_41 : f32 to vector<8x128xf32>
    %136 = arith.subf %135, %60 : vector<8x128xf32>
    %137 = arith.mulf %136, %131 : vector<8x128xf32>
    %138 = arith.select %133, %134, %137 : vector<8x128xi1>, vector<8x128xf32>
    %c0_42 = arith.constant 0 : index
    %c0_43 = arith.constant 0 : index
    %139 = vector.load %arg2[%c0_42, %c0_43] : memref<8x128xf32, #tpu.memory_space<vmem>>, vector<8x128xf32>
    tpu.vector_store %arg2[%c0_42, %c0_43], %138 {strides = array<i32>} : memref<8x128xf32, #tpu.memory_space<vmem>>, vector<8x128xf32>,
    return
  }
  func.func @transform_0(%arg0: i32) -> i32 {
    %c0_i32 = arith.constant 0 : i32
    %c0_i32_0 = arith.constant 0 : i32
    return %c0_i32 : i32
  }
  func.func @transform_1(%arg0: i32) -> (i32, i32) {
    %c0_i32 = arith.constant 0 : i32
    %c0_i32_0 = arith.constant 0 : i32
    return %arg0, %c0_i32 : i32, i32
  }
}

</mosaic_0001>

<llo_original>
// kernel: tpu_custom_call.1
$region0: #{tpu_custom_call.1}
  #allocation0 [shape = 'u32[]', space=smem, size = 0x4, offset = 0x4, fixed_abs, tag = 'smem constant byte address 0x4 - core index']
  #allocation1 [shape = 'u32[144,128]{1,0:T(1,128)}', space=vmem, size = 0x12000, scoped, tag = 'internal scratch']
  #allocation2 [shape = 's32[1]{0:T(128)S(6)}', space=smem, size = 0x200, scoped, tag = 'scoped memory for tpu_custom_call.1']
  %s0 = inlined_call_operand.<no memory space> [shape: s32[1], index: 0, kind: input, shape index: {}]
  %s1 = inlined_call_operand.hbm [shape: f32[8,128], index: 1, kind: output, shape index: {}]
  %s2 = sld [smem:[#allocation0]]
  $region14: #{tpu_custom_call.1} parent=0
    _
  %s4 = ssub.s32 1, %s2
  %s5 = scalar_select 0, %s4, %s2
  %6 = sst [smem:[#allocation2]] %s0
  $region1: #{tpu_custom_call.1} parent=0
    #allocation3 [shape = 'u8[4096]{0}', space=vmem, size = 0x1000, scoped, tag = 'output window, operand 0, single buffered']
    #allocation4 [shape = 's32[1]{0}', space=sflag, size = 0x4, scoped, tag = 'scoped memory for tpu_custom_call.1']
    %7 = vsyncpa [#allocation4], 0
    // Predicated region
    $region2: #{tpu_custom_call.1} parent=1 // pred_check
      _
    $region3: #{tpu_custom_call.1} parent=1 // pred_check_branch
      %9 = sbr.rel (0) target = $region5
    $region4: #{tpu_custom_call.1} parent=1 // pred_region
      _
    $region5: #{tpu_custom_call.1} parent=1 // pred_fallthru
      _
    %v10 = vlaneseq
    %v11 = vshrl.u32 %v10, 7
    %v12 = vlaneseq
    %v13 = vand.u32 %v12, 127
    %s14 = smul.u32 0, 8
    %v15 = vstv %s14
    %v16 = vadd.s32 %v15, %v11
    %v17 = vmul.u32 %v16, 128
    %v18 = vadd.s32 %v17, %v13
    %s19 = sld [smem:[#allocation2]]
    %s20 = sxor.u32 %s19, 1542469173
    %s21 = sshra.s32 %s20, 16
    %s22 = sand.u32 %s21, 65535
    %s23 = sxor.u32 %s20, %s22
    %s24 = smul.u32 %s23, 2146121005
    %s25 = sshra.s32 %s24, 15
    %s26 = sand.u32 %s25, 131071
    %s27 = sxor.u32 %s24, %s26
    %s28 = smul.u32 %s27, 2221713035
    %s29 = sshra.s32 %s28, 16
    %s30 = sand.u32 %s29, 65535
    %s31 = sxor.u32 %s28, %s30
    %v32 = vmul.u32 %v18, 2654435761
    %v33 = vstv %s31
    %v34 = vadd.s32 %v32, %v33
    %v35 = vshra.s32 %v34, 16
    %v36 = vand.u32 %v35, 65535
    %v37 = vxor.u32 %v34, %v36
    %v38 = vmul.u32 %v37, 2146121005
    %v39 = vshra.s32 %v38, 15
    %v40 = vand.u32 %v39, 131071
    %v41 = vxor.u32 %v38, %v40
    %v42 = vmul.u32 %v41, 2221713035
    %v43 = vshra.s32 %v42, 16
    %v44 = vand.u32 %v43, 65535
    %v45 = vxor.u32 %v42, %v44
    %v46 = vshra.s32 %v45, 9
    %v47 = vand.u32 %v46, 8388607
    %v48 = vcvt.s32.f32 %v47
    %v49 = vadd.f32 %v48, 0.5
    %v50 = vmul.f32 %v49, 1.1920929e-07
    %v51 = vsub.f32 1.0, %v50
    %v52 = vmin.f32 %v50, %v51
    %vm53 = vcmp.lt.f32.partialorder %v50, 0.5
    %v54 = vsel %vm53, 1.0, -1.0
    %v55 = vlog2.pop %v52
    %v56 = vmul.f32 %v55, 0.6931472
    %v57 = vmul.f32 %v56, -2.0
    %v58 = vrsqrt.pop %v57
    %v59 = vmul.f32 %v57, %v58
    %vm60 = vcmp.eq.f32.partialorder %v57, inf
    %v61 = vsel %vm60, %v57, %v59
    %vm62 = vcmp.eq.f32.partialorder %v57, 0.0
    %v63 = vand.u32 %v57, 2147483648
    %v64 = vsel %vm62, %v63, %v61
    %v65 = vmul.f32 %v64, -0.007784894
    %v66 = vadd.f32 %v65, -0.32239646
    %v67 = vmul.f32 %v66, %v64
    %v68 = vadd.f32 %v67, -2.4007583
    %v69 = vmul.f32 %v68, %v64
    %v70 = vadd.f32 %v69, -2.5497324
    %v71 = vmul.f32 %v70, %v64
    %v72 = vadd.f32 %v71, 4.3746643
    %v73 = vmul.f32 %v72, %v64
    %v74 = vadd.f32 %v73, 2.938164
    %v75 = vmul.f32 %v64, 0.007784696
    %v76 = vadd.f32 %v75, 0.32246712
    %v77 = vmul.f32 %v76, %v64
    %v78 = vadd.f32 %v77, 2.4451342
    %v79 = vmul.f32 %v78, %v64
    %v80 = vadd.f32 %v79, 3.7544086
    %v81 = vmul.f32 %v80, %v64
    %v82 = vadd.f32 %v81, 1.0
    %v83 = vrcp.pop %v82
    %v84 = vmul.f32 %v74, %v83
    %v85 = vsub.f32 0.5, %v52
    %v86 = vmul.f32 %v85, %v85
    %v87 = vmul.f32 %v86, -39.69683
    %v88 = vadd.f32 %v87, 220.9461
    %v89 = vmul.f32 %v88, %v86
    %v90 = vadd.f32 %v89, -275.9285
    %v91 = vmul.f32 %v90, %v86
    %v92 = vadd.f32 %v91, 138.35776
    %v93 = vmul.f32 %v92, %v86
    %v94 = vadd.f32 %v93, -30.664799
    %v95 = vmul.f32 %v94, %v86
    %v96 = vadd.f32 %v95, 2.5066283
    %v97 = vmul.f32 %v96, %v85
    %v98 = vmul.f32 %v86, -54.476097
    %v99 = vadd.f32 %v98, 161.58583
    %v100 = vmul.f32 %v99, %v86
    %v101 = vadd.f32 %v100, -155.69897
    %v102 = vmul.f32 %v101, %v86
    %v103 = vadd.f32 %v102, 66.801315
    %v104 = vmul.f32 %v103, %v86
    %v105 = vadd.f32 %v104, -13.280682
    %v106 = vmul.f32 %v105, %v86
    %v107 = vadd.f32 %v106, 1.0
    %v108 = vrcp.pop %v107
    %v109 = vmul.f32 %v97, %v108
    %vm110 = vcmp.lt.f32.partialorder %v52, 0.02425
    %v111 = vmul.f32 %v54, %v84
    %v112 = vsub.f32 0.0, %v54
    %v113 = vmul.f32 %v112, %v109
    %v114 = vsel %vm110, %v111, %v113
    %115 = vst [vmem:[#allocation3] sm:$0xff] %v114
    // Predicated region
    $region6: #{tpu_custom_call.1} parent=1 // pred_check
      _
    $region7: #{tpu_custom_call.1} parent=1 // pred_check_branch
      %117 = sbr.rel (0) target = $region9
    $region8: #{tpu_custom_call.1} parent=1 // pred_region
      %s119 = ssub.s32 128, 128
      %120 = vsyncadd [#allocation4], %s119
      %s122 = sshll.u32 [#allocation3], 4
      %s123 = int_to_ptr.vmem [resolvable:$true] %s122
      %125 = dma.vmem_to_hbm [thread:$0]  %s123, 128, %s1, [#allocation4]
    $region9: #{tpu_custom_call.1} parent=1 // pred_fallthru
      _
    // Predicated region
    $region10: #{tpu_custom_call.1} parent=1 // pred_check
      _
    $region11: #{tpu_custom_call.1} parent=1 // pred_check_branch
      %127 = sbr.rel (0) target = $region13
    $region12: #{tpu_custom_call.1} parent=1 // pred_region
      %128 = dma.done [#allocation4], 128
    $region13: #{tpu_custom_call.1} parent=1 // pred_fallthru
      _
    %129 = vsyncpa [#allocation4], 1

</llo_original>
